<compile_context>
chip_gen: v5e
topology: v5e:2x2
jax: 0.10.0
libtpu: 0.0.40
codegen_flags: <defaults>
</compile_context>

<pallas_src>
import jax
import jax.numpy as jnp
from jax.experimental import pallas as pl
from jax.experimental.pallas import tpu as pltpu


# ----------------------------------------------------------------------------
# Fused Pallas kernel (transposed formulation), one batch element per step:
#   o = relu(W3 @ relu(W2 @ relu(W1 @ colsT + b1) + b2) + b3)   -> NCHW layout
# ----------------------------------------------------------------------------
def _fused_backbone_kernel(colsT_ref, w1_ref, b1_ref, w2_ref, b2_ref,
                           w3_ref, b3_ref, o_ref):
    colsT = colsT_ref[0]                                     # (K1p, L) bf16

    # conv1 (3x3 / stride 2 via im2col): bf16 MXU inputs, f32 accumulate.
    h1 = jnp.dot(w1_ref[...], colsT, preferred_element_type=jnp.float32)
    h1 = jnp.maximum(h1 + b1_ref[...], 0.0)                  # (C1, L) f32

    # conv2 (1x1): intermediate never leaves VMEM/vregs.
    h2 = jnp.dot(w2_ref[...], h1.astype(jnp.bfloat16),
                 preferred_element_type=jnp.float32)
    h2 = jnp.maximum(h2 + b2_ref[...], 0.0)                  # (C2, L) f32

    # classifier head (1x1); result is already (K, Ho*Wo) == NCHW flatten order.
    h3 = jnp.dot(w3_ref[...], h2.astype(jnp.bfloat16),
                 preferred_element_type=jnp.float32)
    o_ref[0, :, :] = jnp.maximum(h3 + b3_ref[...], 0.0).astype(o_ref.dtype)


def fused_backbone(colsT, w1t, b1, w2t, b2, w3t, b3):
    """colsT:[B,K1p,L] bf16, weights transposed -> out [B, K, L] f32 (NCHW)."""
    B, K1p, L = colsT.shape
    C1 = w1t.shape[0]
    C2 = w2t.shape[0]
    K = w3t.shape[0]

    return pl.pallas_call(
        _fused_backbone_kernel,
        out_shape=jax.ShapeDtypeStruct((B, K, L), jnp.float32),
        grid=(B,),
        in_specs=[
            pl.BlockSpec((1, K1p, L), lambda b: (b, 0, 0)),   # per-image patches
            pl.BlockSpec((C1, K1p), lambda b: (0, 0)),        # grid-invariant weights
            pl.BlockSpec((C1, 1), lambda b: (0, 0)),
            pl.BlockSpec((C2, C1), lambda b: (0, 0)),
            pl.BlockSpec((C2, 1), lambda b: (0, 0)),
            pl.BlockSpec((K, C2), lambda b: (0, 0)),
            pl.BlockSpec((K, 1), lambda b: (0, 0)),
        ],
        out_specs=pl.BlockSpec((1, K, L), lambda b: (b, 0, 0)),
        compiler_params=pltpu.CompilerParams(
            dimension_semantics=("parallel",)),
    )(colsT, w1t, b1, w2t, b2, w3t, b3)


# ----------------------------------------------------------------------------
# Glue: transposed im2col for the 3x3 stride-2 conv (stays in NCHW, bf16)
# ----------------------------------------------------------------------------
def _im2col_nchw_T(x_nchw, ksize, stride, pad, k1_pad):
    """[B,C,H,W] -> ([B, k1_pad, Ho*Wo] bf16, (Ho, Wo)); rows ordered (kh, kw, c)."""
    x = x_nchw.astype(jnp.bfloat16)
    x = jnp.pad(x, ((0, 0), (0, 0), (pad, pad), (pad, pad)))
    B, C, H, W = x.shape
    Ho = (H - ksize) // stride + 1
    Wo = (W - ksize) // stride + 1
    taps = [x[:, :, di:di + stride * Ho:stride, dj:dj + stride * Wo:stride]
            for di in range(ksize) for dj in range(ksize)]
    colsT = jnp.stack(taps, axis=1).reshape(B, ksize * ksize * C, Ho * Wo)
    colsT = jnp.pad(colsT, ((0, 0), (0, k1_pad - ksize * ksize * C), (0, 0)))
    return colsT, (Ho, Wo)


# ----------------------------------------------------------------------------
# Parameters & forward
# ----------------------------------------------------------------------------
def init_params(key, *, c_in=3, c1=32, c_feat=64, num_classes=16):
    # TODO(synk): deterministic random init stands in for torch.hub pretrained
    # weights; the trunk is a scaled-down 2-conv stand-in for the real backbone.
    k = jax.random.split(key, 6)
    scale = 0.05
    return {
        "conv1_w": scale * jax.random.normal(k[0], (c1, c_in, 3, 3), jnp.float32),
        "conv1_b": scale * jax.random.normal(k[1], (c1,), jnp.float32),
        "conv2_w": scale * jax.random.normal(k[2], (c_feat, c1, 1, 1), jnp.float32),
        "conv2_b": scale * jax.random.normal(k[3], (c_feat,), jnp.float32),
        # `features` head: Dropout(identity at eval) + Conv2d(c_feat, K, 1) + ReLU
        "cls_w": scale * jax.random.normal(k[4], (num_classes, c_feat, 1, 1), jnp.float32),
        "cls_b": scale * jax.random.normal(k[5], (num_classes,), jnp.float32),
    }


@jax.jit
def squeeze_backbone_forward(params, x_nchw):
    c1, c_in = params["conv1_w"].shape[:2]
    k1 = 3 * 3 * c_in
    k1p = ((k1 + 15) // 16) * 16       # pad contraction dim 27 -> 32 (free zeros)

    # Transposed im2col for conv1 (3x3, stride 2, pad 1); columns are the
    # spatial positions, which become the kernel's lane dimension.
    colsT, (Ho, Wo) = _im2col_nchw_T(x_nchw, ksize=3, stride=2, pad=1, k1_pad=k1p)
    B = x_nchw.shape[0]

    # Weights: PyTorch [Cout,Cin,kh,kw] -> transposed matmul layouts, bf16 MXU.
    w1t = jnp.transpose(params["conv1_w"], (0, 2, 3, 1)).reshape(c1, k1)
    w1t = jnp.pad(w1t, ((0, 0), (0, k1p - k1))).astype(jnp.bfloat16)   # (C1, K1p)
    b1 = params["conv1_b"].reshape(-1, 1).astype(jnp.float32)          # (C1, 1)
    w2t = params["conv2_w"][:, :, 0, 0].astype(jnp.bfloat16)           # (C2, C1)
    b2 = params["conv2_b"].reshape(-1, 1).astype(jnp.float32)          # (C2, 1)
    w3t = params["cls_w"][:, :, 0, 0].astype(jnp.bfloat16)             # (K,  C2)
    b3 = params["cls_b"].reshape(-1, 1).astype(jnp.float32)            # (K,  1)

    # Kernel output is already [B, K, Ho*Wo] in NCHW order; flatten is free.
    out = fused_backbone(colsT, w1t, b1, w2t, b2, w3t, b3)
    return out.reshape(B, -1)


if __name__ == "__main__":
    key = jax.random.PRNGKey(0)
    pkey, xkey = jax.random.split(key)
    params = init_params(pkey)

    # Small NCHW image batch, consistent with the module's conv-backbone input.
    x = jax.random.normal(xkey, (2, 3, 16, 16), jnp.float32)

    out = squeeze_backbone_forward(params, x)
    out = jax.block_until_ready(out)

    # conv1 (stride 2, pad 1): 16 -> 8 spatial; 16 classes -> 16 * 8 * 8 features.
    assert out.shape == (2, 16 * 8 * 8), out.shape
    assert bool(jnp.all(out >= 0.0))   # final ReLU
    assert bool(jnp.all(jnp.isfinite(out)))
    print("KERNEL_OK")
</pallas_src>

<mosaic_0001>
module attributes {stable_mosaic.version = 11 : i64} {
  func.func @_fused_backbone_kernel(%arg0: i32, %arg1: memref<1x32x64xbf16, #tpu.memory_space<vmem>>, %arg2: memref<32x32xbf16, #tpu.memory_space<vmem>>, %arg3: memref<32x1xf32, #tpu.memory_space<vmem>>, %arg4: memref<64x32xbf16, #tpu.memory_space<vmem>>, %arg5: memref<64x1xf32, #tpu.memory_space<vmem>>, %arg6: memref<16x64xbf16, #tpu.memory_space<vmem>>, %arg7: memref<16x1xf32, #tpu.memory_space<vmem>>, %arg8: memref<1x16x64xf32, #tpu.memory_space<vmem>>) attributes {dimension_semantics = [#tpu.dimension_semantics<parallel>], iteration_bounds = array<i64: 2>, scalar_prefetch = 0 : i64, scratch_operands = 0 : i64, tpu.core_type = #tpu.core_type<tc>, window_params = [{transform_indices = @transform_0, window_bounds = array<i64: 1, 32, 64>}, {pipeline_mode = #tpu.pipeline_mode<synchronous>, transform_indices = @transform_1, window_bounds = array<i64: 32, 32>}, {pipeline_mode = #tpu.pipeline_mode<synchronous>, transform_indices = @transform_2, window_bounds = array<i64: 32, 1>}, {pipeline_mode = #tpu.pipeline_mode<synchronous>, transform_indices = @transform_3, window_bounds = array<i64: 64, 32>}, {pipeline_mode = #tpu.pipeline_mode<synchronous>, transform_indices = @transform_4, window_bounds = array<i64: 64, 1>}, {pipeline_mode = #tpu.pipeline_mode<synchronous>, transform_indices = @transform_5, window_bounds = array<i64: 16, 64>}, {pipeline_mode = #tpu.pipeline_mode<synchronous>, transform_indices = @transform_6, window_bounds = array<i64: 16, 1>}, {transform_indices = @transform_7, window_bounds = array<i64: 1, 16, 64>}]} {
    %c0 = arith.constant 0 : index
    %c0_0 = arith.constant 0 : index
    %c0_1 = arith.constant 0 : index
    %0 = vector.load %arg1[%c0, %c0_0, %c0_1] : memref<1x32x64xbf16, #tpu.memory_space<vmem>>, vector<1x32x64xbf16>
    %1 = vector.shape_cast %0 : vector<1x32x64xbf16> to vector<32x64xbf16>
    %c0_2 = arith.constant 0 : index
    %c0_3 = arith.constant 0 : index
    %2 = vector.load %arg2[%c0_2, %c0_3] : memref<32x32xbf16, #tpu.memory_space<vmem>>, vector<32x32xbf16>
    %cst = arith.constant dense<0.000000e+00> : vector<32x64xf32>
    %3 = tpu.matmul %2, %1, %cst {dimension_numbers = #tpu.dot_dimension_numbers<[1], [0], [0], [1], [0, 0, 1, 1], [], []>} : vector<32x32xbf16>, vector<32x64xbf16>, vector<32x64xf32> -> vector<32x64xf32>
    %c0_4 = arith.constant 0 : index
    %c0_5 = arith.constant 0 : index
    %4 = vector.load %arg3[%c0_4, %c0_5] : memref<32x1xf32, #tpu.memory_space<vmem>>, vector<32x1xf32>
    %5 = vector.broadcast %4 : vector<32x1xf32> to vector<32x64xf32>
    %6 = arith.addf %3, %5 : vector<32x64xf32>
    %cst_6 = arith.constant 0.000000e+00 : f32
    %7 = vector.broadcast %cst_6 : f32 to vector<32x64xf32>
    %8 = arith.maximumf %6, %7 : vector<32x64xf32>
    %c0_7 = arith.constant 0 : index
    %c0_8 = arith.constant 0 : index
    %9 = vector.load %arg4[%c0_7, %c0_8] : memref<64x32xbf16, #tpu.memory_space<vmem>>, vector<64x32xbf16>
    %10 = arith.truncf %8 : vector<32x64xf32> to vector<32x64xbf16>
    %cst_9 = arith.constant dense<0.000000e+00> : vector<64x64xf32>
    %11 = tpu.matmul %9, %10, %cst_9 {dimension_numbers = #tpu.dot_dimension_numbers<[1], [0], [0], [1], [0, 0, 1, 1], [], []>} : vector<64x32xbf16>, vector<32x64xbf16>, vector<64x64xf32> -> vector<64x64xf32>
    %c0_10 = arith.constant 0 : index
    %c0_11 = arith.constant 0 : index
    %12 = vector.load %arg5[%c0_10, %c0_11] : memref<64x1xf32, #tpu.memory_space<vmem>>, vector<64x1xf32>
    %13 = vector.broadcast %12 : vector<64x1xf32> to vector<64x64xf32>
    %14 = arith.addf %11, %13 : vector<64x64xf32>
    %cst_12 = arith.constant 0.000000e+00 : f32
    %15 = vector.broadcast %cst_12 : f32 to vector<64x64xf32>
    %16 = arith.maximumf %14, %15 : vector<64x64xf32>
    %c0_13 = arith.constant 0 : index
    %c0_14 = arith.constant 0 : index
    %17 = vector.load %arg6[%c0_13, %c0_14] : memref<16x64xbf16, #tpu.memory_space<vmem>>, vector<16x64xbf16>
    %18 = arith.truncf %16 : vector<64x64xf32> to vector<64x64xbf16>
    %cst_15 = arith.constant dense<0.000000e+00> : vector<16x64xf32>
    %19 = tpu.matmul %17, %18, %cst_15 {dimension_numbers = #tpu.dot_dimension_numbers<[1], [0], [0], [1], [0, 0, 1, 1], [], []>} : vector<16x64xbf16>, vector<64x64xbf16>, vector<16x64xf32> -> vector<16x64xf32>
    %c0_16 = arith.constant 0 : index
    %c0_17 = arith.constant 0 : index
    %20 = vector.load %arg7[%c0_16, %c0_17] : memref<16x1xf32, #tpu.memory_space<vmem>>, vector<16x1xf32>
    %21 = vector.broadcast %20 : vector<16x1xf32> to vector<16x64xf32>
    %22 = arith.addf %19, %21 : vector<16x64xf32>
    %cst_18 = arith.constant 0.000000e+00 : f32
    %23 = vector.broadcast %cst_18 : f32 to vector<16x64xf32>
    %24 = arith.maximumf %22, %23 : vector<16x64xf32>
    %c0_19 = arith.constant 0 : index
    %c0_20 = arith.constant 0 : index
    %c0_21 = arith.constant 0 : index
    %25 = vector.load %arg8[%c0_19, %c0_20, %c0_21] : memref<1x16x64xf32, #tpu.memory_space<vmem>>, vector<1x16x64xf32>
    %26 = vector.shape_cast %25 : vector<1x16x64xf32> to vector<16x64xf32>
    %27 = vector.shape_cast %24 : vector<16x64xf32> to vector<1x16x64xf32>
    tpu.vector_store %arg8[%c0_19, %c0_20, %c0_21], %27 {strides = array<i32>} : memref<1x16x64xf32, #tpu.memory_space<vmem>>, vector<1x16x64xf32>,
    return
  }
  func.func @transform_0(%arg0: i32) -> (i32, i32, i32) {
    %c0_i32 = arith.constant 0 : i32
    %c0_i32_0 = arith.constant 0 : i32
    %c0_i32_1 = arith.constant 0 : i32
    return %arg0, %c0_i32, %c0_i32_0 : i32, i32, i32
  }
  func.func @transform_1(%arg0: i32) -> (i32, i32) {
    %c0_i32 = arith.constant 0 : i32
    %c0_i32_0 = arith.constant 0 : i32
    %c0_i32_1 = arith.constant 0 : i32
    return %c0_i32, %c0_i32_0 : i32, i32
  }
  func.func @transform_2(%arg0: i32) -> (i32, i32) {
    %c0_i32 = arith.constant 0 : i32
    %c0_i32_0 = arith.constant 0 : i32
    %c0_i32_1 = arith.constant 0 : i32
    return %c0_i32, %c0_i32_0 : i32, i32
  }
  func.func @transform_3(%arg0: i32) -> (i32, i32) {
    %c0_i32 = arith.constant 0 : i32
    %c0_i32_0 = arith.constant 0 : i32
    %c0_i32_1 = arith.constant 0 : i32
    return %c0_i32, %c0_i32_0 : i32, i32
  }
  func.func @transform_4(%arg0: i32) -> (i32, i32) {
    %c0_i32 = arith.constant 0 : i32
    %c0_i32_0 = arith.constant 0 : i32
    %c0_i32_1 = arith.constant 0 : i32
    return %c0_i32, %c0_i32_0 : i32, i32
  }
  func.func @transform_5(%arg0: i32) -> (i32, i32) {
    %c0_i32 = arith.constant 0 : i32
    %c0_i32_0 = arith.constant 0 : i32
    %c0_i32_1 = arith.constant 0 : i32
    return %c0_i32, %c0_i32_0 : i32, i32
  }
  func.func @transform_6(%arg0: i32) -> (i32, i32) {
    %c0_i32 = arith.constant 0 : i32
    %c0_i32_0 = arith.constant 0 : i32
    %c0_i32_1 = arith.constant 0 : i32
    return %c0_i32, %c0_i32_0 : i32, i32
  }
  func.func @transform_7(%arg0: i32) -> (i32, i32, i32) {
    %c0_i32 = arith.constant 0 : i32
    %c0_i32_0 = arith.constant 0 : i32
    %c0_i32_1 = arith.constant 0 : i32
    return %arg0, %c0_i32, %c0_i32_0 : i32, i32, i32
  }
}

</mosaic_0001>

<llo_original>
// kernel: squeeze_backbone_forward.1
$region0: #{squeeze_backbone_forward.1}
  #allocation0 [shape = 'u32[]', space=smem, size = 0x4, offset = 0x4, fixed_abs, tag = 'smem constant byte address 0x4 - core index']
  #allocation1 [shape = 'u32[72,128]{1,0:T(1,128)}', space=vmem, size = 0x9000, scoped, tag = 'internal scratch']
  %s0 = inlined_call_operand.vmem [shape: bf16[2,32,64], index: 0, kind: input, shape index: {}]
  %s1 = inlined_call_operand.vmem [shape: bf16[32,32], index: 1, kind: input, shape index: {}]
  %s2 = inlined_call_operand.vmem [shape: f32[32,1], index: 2, kind: input, shape index: {}]
  %s3 = inlined_call_operand.vmem [shape: bf16[64,32], index: 3, kind: input, shape index: {}]
  %s4 = inlined_call_operand.vmem [shape: f32[64,1], index: 4, kind: input, shape index: {}]
  %s5 = inlined_call_operand.vmem [shape: bf16[16,64], index: 5, kind: input, shape index: {}]
  %s6 = inlined_call_operand.vmem [shape: f32[16,1], index: 6, kind: input, shape index: {}]
  %s7 = inlined_call_operand.vmem [shape: f32[2,16,64], index: 7, kind: output, shape index: {}]
  %s8 = sld [smem:[#allocation0]]
  $region61: #{squeeze_backbone_forward.1} parent=0
    _
  %s10 = ssub.s32 1, %s8
  %s11 = scalar_select 0, %s10, %s8
  loop: start=0, step=1, limit=4
  $region2: #{squeeze_backbone_forward.1} parent=0 // loop_pre_header
    _
  $region3: #{squeeze_backbone_forward.1} parent=0 // loop_header
    %s13 = sphi 0, %s17
    %p14 = scmp.ge.s32.totalorder %s13, 4
    %s23 = sphi 0, %s25
    %s26 = sphi 0, %s23
    %s27 = sphi 0, %s26
    %s43 = sphi 0, %s27
    %s47 = sphi 0, %s47
    %s49 = sphi 0, %s47
    %s50 = sphi 0, %s49
    %s64 = sphi 0, %s50
    %s68 = sphi 0, %s68
    %s70 = sphi 0, %s68
    %s71 = sphi 0, %s70
    %s85 = sphi 0, %s71
    %s89 = sphi 0, %s89
    %s91 = sphi 0, %s89
    %s92 = sphi 0, %s91
    %s106 = sphi 0, %s92
    %s110 = sphi 0, %s110
    %s112 = sphi 0, %s110
    %s113 = sphi 0, %s112
    %s127 = sphi 0, %s113
    %s131 = sphi 0, %s131
    %s133 = sphi 0, %s131
    %s134 = sphi 0, %s133
    %s148 = sphi 0, %s134
    %s152 = sphi 0, %s152
    %s154 = sphi 0, %s152
    %s155 = sphi 0, %s154
    %s169 = sphi 0, %s155
    %s175 = sphi 0, %s177
    %s178 = sphi 0, %s175
    %s179 = sphi 0, %s178
    %s195 = sphi 0, %s179
  $region4: #{squeeze_backbone_forward.1} parent=0 // loop_header_branch
    %16 = sbr.rel (%p14) target = $region8
  $region5: #{squeeze_backbone_forward.1} parent=0 // loop_body
    %s18 = ssub.s32 %s13, 1
    %s19 = ssub.s32 %s13, 2
    %s20 = sadd.s32 %s13, 1
    %s21 = ssub.s32 %s13, %s20
    %p22 = scmp.eq.s32.totalorder %s21, 0
    %s24 = sadd.s32 %s23, 1
    %s25 = scalar_select %p22, %s23, %s24
    %p28 = pneg %p22
    %p29 = scmp.eq.s32.totalorder %s13, 1
    %p30 = por %p28, %p29
    %p31 = scmp.ne.s32.totalorder %s23, %s26
    %p32 = scmp.eq.s32.totalorder %s13, 0
    %p33 = por %p31, %p32
    %p34 = scmp.ne.s32.totalorder %s23, %s26
    %p35 = scmp.eq.s32.totalorder %s18, 1
    %p36 = por %p34, %p35
    %p37 = scmp.ne.s32.totalorder %s26, %s27
    %p38 = scmp.eq.s32.totalorder %s18, 0
    %p39 = por %p37, %p38
    %p40 = scmp.ne.s32.totalorder %s26, %s27
    %p41 = scmp.eq.s32.totalorder %s19, 1
    %p42 = por %p40, %p41
    %p44 = scmp.ne.s32.totalorder %s27, %s43
    %p45 = scmp.eq.s32.totalorder %s19, 0
    %p46 = por %p44, %p45
    %s48 = sadd.s32 %s47, 1
    %p51 = scmp.eq.s32.totalorder %s13, 1
    %p52 = scmp.ne.s32.totalorder %s47, %s49
    %p53 = scmp.eq.s32.totalorder %s13, 0
    %p54 = por %p52, %p53
    %p55 = scmp.ne.s32.totalorder %s47, %s49
    %p56 = scmp.eq.s32.totalorder %s18, 1
    %p57 = por %p55, %p56
    %p58 = scmp.ne.s32.totalorder %s49, %s50
    %p59 = scmp.eq.s32.totalorder %s18, 0
    %p60 = por %p58, %p59
    %p61 = scmp.ne.s32.totalorder %s49, %s50
    %p62 = scmp.eq.s32.totalorder %s19, 1
    %p63 = por %p61, %p62
    %p65 = scmp.ne.s32.totalorder %s50, %s64
    %p66 = scmp.eq.s32.totalorder %s19, 0
    %p67 = por %p65, %p66
    %s69 = sadd.s32 %s68, 1
    %p72 = scmp.eq.s32.totalorder %s13, 1
    %p73 = scmp.ne.s32.totalorder %s68, %s70
    %p74 = scmp.eq.s32.totalorder %s13, 0
    %p75 = por %p73, %p74
    %p76 = scmp.ne.s32.totalorder %s68, %s70
    %p77 = scmp.eq.s32.totalorder %s18, 1
    %p78 = por %p76, %p77
    %p79 = scmp.ne.s32.totalorder %s70, %s71
    %p80 = scmp.eq.s32.totalorder %s18, 0
    %p81 = por %p79, %p80
    %p82 = scmp.ne.s32.totalorder %s70, %s71
    %p83 = scmp.eq.s32.totalorder %s19, 1
    %p84 = por %p82, %p83
    %p86 = scmp.ne.s32.totalorder %s71, %s85
    %p87 = scmp.eq.s32.totalorder %s19, 0
    %p88 = por %p86, %p87
    %s90 = sadd.s32 %s89, 1
    %p93 = scmp.eq.s32.totalorder %s13, 1
    %p94 = scmp.ne.s32.totalorder %s89, %s91
    %p95 = scmp.eq.s32.totalorder %s13, 0
    %p96 = por %p94, %p95
    %p97 = scmp.ne.s32.totalorder %s89, %s91
    %p98 = scmp.eq.s32.totalorder %s18, 1
    %p99 = por %p97, %p98
    %p100 = scmp.ne.s32.totalorder %s91, %s92
    %p101 = scmp.eq.s32.totalorder %s18, 0
    %p102 = por %p100, %p101
    %p103 = scmp.ne.s32.totalorder %s91, %s92
    %p104 = scmp.eq.s32.totalorder %s19, 1
    %p105 = por %p103, %p104
    %p107 = scmp.ne.s32.totalorder %s92, %s106
    %p108 = scmp.eq.s32.totalorder %s19, 0
    %p109 = por %p107, %p108
    %s111 = sadd.s32 %s110, 1
    %p114 = scmp.eq.s32.totalorder %s13, 1
    %p115 = scmp.ne.s32.totalorder %s110, %s112
    %p116 = scmp.eq.s32.totalorder %s13, 0
    %p117 = por %p115, %p116
    %p118 = scmp.ne.s32.totalorder %s110, %s112
    %p119 = scmp.eq.s32.totalorder %s18, 1
    %p120 = por %p118, %p119
    %p121 = scmp.ne.s32.totalorder %s112, %s113
    %p122 = scmp.eq.s32.totalorder %s18, 0
    %p123 = por %p121, %p122
    %p124 = scmp.ne.s32.totalorder %s112, %s113
    %p125 = scmp.eq.s32.totalorder %s19, 1
    %p126 = por %p124, %p125
    %p128 = scmp.ne.s32.totalorder %s113, %s127
    %p129 = scmp.eq.s32.totalorder %s19, 0
    %p130 = por %p128, %p129
    %s132 = sadd.s32 %s131, 1
    %p135 = scmp.eq.s32.totalorder %s13, 1
    %p136 = scmp.ne.s32.totalorder %s131, %s133
    %p137 = scmp.eq.s32.totalorder %s13, 0
    %p138 = por %p136, %p137
    %p139 = scmp.ne.s32.totalorder %s131, %s133
    %p140 = scmp.eq.s32.totalorder %s18, 1
    %p141 = por %p139, %p140
    %p142 = scmp.ne.s32.totalorder %s133, %s134
    %p143 = scmp.eq.s32.totalorder %s18, 0
    %p144 = por %p142, %p143
    %p145 = scmp.ne.s32.totalorder %s133, %s134
    %p146 = scmp.eq.s32.totalorder %s19, 1
    %p147 = por %p145, %p146
    %p149 = scmp.ne.s32.totalorder %s134, %s148
    %p150 = scmp.eq.s32.totalorder %s19, 0
    %p151 = por %p149, %p150
    %s153 = sadd.s32 %s152, 1
    %p156 = scmp.eq.s32.totalorder %s13, 1
    %p157 = scmp.ne.s32.totalorder %s152, %s154
    %p158 = scmp.eq.s32.totalorder %s13, 0
    %p159 = por %p157, %p158
    %p160 = scmp.ne.s32.totalorder %s152, %s154
    %p161 = scmp.eq.s32.totalorder %s18, 1
    %p162 = por %p160, %p161
    %p163 = scmp.ne.s32.totalorder %s154, %s155
    %p164 = scmp.eq.s32.totalorder %s18, 0
    %p165 = por %p163, %p164
    %p166 = scmp.ne.s32.totalorder %s154, %s155
    %p167 = scmp.eq.s32.totalorder %s19, 1
    %p168 = por %p166, %p167
    %p170 = scmp.ne.s32.totalorder %s155, %s169
    %p171 = scmp.eq.s32.totalorder %s19, 0
    %p172 = por %p170, %p171
    %s173 = ssub.s32 %s13, %s20
    %p174 = scmp.eq.s32.totalorder %s173, 0
    %s176 = sadd.s32 %s175, 1
    %s177 = scalar_select %p174, %s175, %s176
    %p180 = pneg %p174
    %p181 = scmp.eq.s32.totalorder %s13, 1
    %p182 = por %p180, %p181
    %p183 = scmp.ne.s32.totalorder %s175, %s178
    %p184 = scmp.eq.s32.totalorder %s13, 0
    %p185 = por %p183, %p184
    %p186 = scmp.ne.s32.totalorder %s175, %s178
    %p187 = scmp.eq.s32.totalorder %s18, 1
    %p188 = por %p186, %p187
    %p189 = scmp.ne.s32.totalorder %s178, %s179
    %p190 = scmp.eq.s32.totalorder %s18, 0
    %p191 = por %p189, %p190
    %p192 = scmp.ne.s32.totalorder %s178, %s179
    %p193 = scmp.eq.s32.totalorder %s19, 1
    %p194 = por %p192, %p193
    %p196 = scmp.ne.s32.totalorder %s179, %s195
    %p197 = scmp.eq.s32.totalorder %s19, 0
    %p198 = por %p196, %p197
    %p199 = scmp.le.s32.totalorder 1, %s13
    %p200 = scmp.lt.s32.totalorder %s13, 3
    %p201 = pnand %p199, %p200
    %p202 = pneg %p201
    // Predicated region
    $region9: #{squeeze_backbone_forward.1} parent=5 // pred_check
      _
    $region10: #{squeeze_backbone_forward.1} parent=5 // pred_check_branch
      %204 = sbr.rel (%p201) target = $region12
    $region11: #{squeeze_backbone_forward.1} parent=5 // pred_region
      %s205 = ssub.s32 %s13, 1
      // Predicated region
      $region13: #{squeeze_backbone_forward.1} parent=11 // pred_check
        %p206 = pneg %p60
      $region14: #{squeeze_backbone_forward.1} parent=11 // pred_check_branch
        %208 = sbr.rel (%p206) target = $region16
      $region15: #{squeeze_backbone_forward.1} parent=11 // pred_region
        _
      $region16: #{squeeze_backbone_forward.1} parent=11 // pred_fallthru
        _
      // Predicated region
      $region17: #{squeeze_backbone_forward.1} parent=11 // pred_check
        %p209 = pneg %p81
      $region18: #{squeeze_backbone_forward.1} parent=11 // pred_check_branch
        %211 = sbr.rel (%p209) target = $region20
      $region19: #{squeeze_backbone_forward.1} parent=11 // pred_region
        _
      $region20: #{squeeze_backbone_forward.1} parent=11 // pred_fallthru
        _
      // Predicated region
      $region21: #{squeeze_backbone_forward.1} parent=11 // pred_check
        %p212 = pneg %p102
      $region22: #{squeeze_backbone_forward.1} parent=11 // pred_check_branch
        %214 = sbr.rel (%p212) target = $region24
      $region23: #{squeeze_backbone_forward.1} parent=11 // pred_region
        _
      $region24: #{squeeze_backbone_forward.1} parent=11 // pred_fallthru
        _
      // Predicated region
      $region25: #{squeeze_backbone_forward.1} parent=11 // pred_check
        %p215 = pneg %p123
      $region26: #{squeeze_backbone_forward.1} parent=11 // pred_check_branch
        %217 = sbr.rel (%p215) target = $region28
      $region27: #{squeeze_backbone_forward.1} parent=11 // pred_region
        _
      $region28: #{squeeze_backbone_forward.1} parent=11 // pred_fallthru
        _
      // Predicated region
      $region29: #{squeeze_backbone_forward.1} parent=11 // pred_check
        %p218 = pneg %p144
      $region30: #{squeeze_backbone_forward.1} parent=11 // pred_check_branch
        %220 = sbr.rel (%p218) target = $region32
      $region31: #{squeeze_backbone_forward.1} parent=11 // pred_region
        _
      $region32: #{squeeze_backbone_forward.1} parent=11 // pred_fallthru
        _
      // Predicated region
      $region33: #{squeeze_backbone_forward.1} parent=11 // pred_check
        %p221 = pneg %p165
      $region34: #{squeeze_backbone_forward.1} parent=11 // pred_check_branch
        %223 = sbr.rel (%p221) target = $region36
      $region35: #{squeeze_backbone_forward.1} parent=11 // pred_region
        _
      $region36: #{squeeze_backbone_forward.1} parent=11 // pred_fallthru
        _
    $region12: #{squeeze_backbone_forward.1} parent=5 // pred_fallthru
      _
    %p224 = scmp.lt.s32.totalorder %s13, 2
    // Predicated region
    $region37: #{squeeze_backbone_forward.1} parent=5 // pred_check
      %p225 = pneg %p224
    $region38: #{squeeze_backbone_forward.1} parent=5 // pred_check_branch
      %227 = sbr.rel (%p225) target = $region40
    $region39: #{squeeze_backbone_forward.1} parent=5 // pred_region
      // Predicated region
      $region41: #{squeeze_backbone_forward.1} parent=39 // pred_check
        %p228 = pneg %p33
      $region42: #{squeeze_backbone_forward.1} parent=39 // pred_check_branch
        %230 = sbr.rel (%p228) target = $region44
      $region43: #{squeeze_backbone_forward.1} parent=39 // pred_region
        %p231 = scmp.lt.s32.totalorder %s13, 1
        %s232 = scalar_select %p231, %s13, 1
        %s233 = smul.addr %s232, 4
        %s234 = smul.addr %s233, 4
        %s235 = scalar_lea.vmem %s0, %s234
      $region44: #{squeeze_backbone_forward.1} parent=39 // pred_fallthru
        _
    $region40: #{squeeze_backbone_forward.1} parent=5 // pred_fallthru
      _
    %p236 = scmp.le.s32.totalorder 1, %s13
    %p237 = scmp.lt.s32.totalorder %s13, 3
    %p238 = pnand %p236, %p237
    %p239 = pneg %p238
    // Predicated region
    $region45: #{squeeze_backbone_forward.1} parent=5 // pred_check
      _
    $region46: #{squeeze_backbone_forward.1} parent=5 // pred_check_branch
      %241 = sbr.rel (%p238) target = $region48
    $region47: #{squeeze_backbone_forward.1} parent=5 // pred_region
      %s242 = ssub.s32 %s13, 1
      %p243 = scmp.lt.s32.totalorder %s18, 1
      %s244 = scalar_select %p243, %s18, 1
      %s245 = smul.addr %s244, 4
      %s246 = smul.addr %s245, 4
      %s247 = scalar_lea.vmem %s0, %s246
      %p248 = pneg %p39
      %p249 = pneg %p36
      %p250 = pneg %p60
      %p251 = pneg %p57
      %p252 = pneg %p81
      %p253 = pneg %p78
      %p254 = pneg %p102
      %p255 = pneg %p99
      %p256 = pneg %p123
      %p257 = pneg %p120
      %p258 = pneg %p144
      %p259 = pneg %p141
      %p260 = pneg %p165
      %p261 = pneg %p162
      %p262 = pneg %p191
      %p263 = pneg %p188
      %p264 = scmp.lt.s32.totalorder %s18, 1
      %s265 = scalar_select %p264, %s18, 1
      %s266 = smul.addr %s265, 2
      %s267 = smul.addr %s266, 8
      %s268 = scalar_lea.vmem %s7, %s267
      %p269 = scmp.lt.s32.totalorder %s18, 1
      %s270 = scalar_select %p269, %s18, 1
      %s271 = smul.addr %s270, 4
      %s272 = smul.addr %s271, 4
      %s273 = scalar_lea.vmem %s0, %s272
      %p274 = scmp.lt.s32.totalorder %s18, 1
      %s275 = scalar_select %p274, %s18, 1
      %s276 = smul.addr %s275, 2
      %s277 = smul.addr %s276, 8
      %s278 = scalar_lea.vmem %s7, %s277
      %v280 = vld [vmem:[%s273] sm:$0xf]
      %v281 = vld [vmem:[%s273 + $0x4] sm:$0xf]
      %v282 = vld [vmem:[%s273 + $0x8] sm:$0xf]
      %v283 = vld [vmem:[%s273 + $0xc] sm:$0xf]
      %v284 = vld [vmem:[%s1] sm:$0xf]
      %v285 = vld [vmem:[%s1 + $0x4] sm:$0xf]
      %v286 = vld [vmem:[%s1 + $0x8] sm:$0xf]
      %v287 = vld [vmem:[%s1 + $0xc] sm:$0xf]
      %v288 = vld [vmem:[%s2] sm:$0xff]
      %v289 = vld [vmem:[%s2 + $0x8] sm:$0xff]
      %v290 = vld [vmem:[%s2 + $0x10] sm:$0xff]
      %v291 = vld [vmem:[%s2 + $0x18] sm:$0xff]
      %293 = vset.pattern.permute.xlu0 0
      %294 = vperm.xlu0 %293, %v288
      %v295 = vpop.permute.xlu0 %294
      %298 = vset.pattern.permute.xlu0 0
      %299 = vperm.xlu0 %298, %v289
      %v300 = vpop.permute.xlu0 %299
      %303 = vset.pattern.permute.xlu0 0
      %304 = vperm.xlu0 %303, %v290
      %v305 = vpop.permute.xlu0 %304
      %308 = vset.pattern.permute.xlu0 0
      %309 = vperm.xlu0 %308, %v291
      %v310 = vpop.permute.xlu0 %309
      %v316 = vunpack.c.l.b16 %v284
      %v317 = vunpack.c.l.b16 %v285
      %v318 = vunpack.c.l.b16 %v286
      %v319 = vunpack.c.l.b16 %v287
      %v320 = vpack.c.b16 %v317, %v316
      %v321 = vpack.c.b16 %v319, %v318
      %v326 = vunpack.c.l.b16 %v280
      %v327 = vunpack.c.l.b16 %v281
      %v328 = vunpack.c.l.b16 %v282
      %v329 = vunpack.c.l.b16 %v283
      %v330 = vpack.c.b16 %v327, %v326
      %v331 = vpack.c.b16 %v329, %v328
      %vm334 = vcmask 261120
      %v336 = vsel %vm334, %v320, 0
      %v339 = vsel %vm334, %v321, 0
      %341 = vmatpush.bf16.msra.mxu0 0
      %342 = vmatpush.bf16.msra.mxu0 0
      %343 = vmatpush.bf16.msra.mxu0 0
      %344 = vmatpush.bf16.msra.mxu0 0
      %345 = vmatpush.bf16.msra.mxu0 0
      %346 = vmatpush.bf16.msra.mxu0 0
      %347 = vmatpush.bf16.msra.mxu0 %v331
      %348 = vmatpush.bf16.msra.mxu0 %v330
      %349 = vmatmul.bf16.gmra.mxu0 %v336
      %v350 = vpop.f32.mrf.mxu0
      %v351 = vadd.f32 %v295, %v350
      %v352 = vpop.f32.mrf.mxu0
      %v353 = vadd.f32 %v300, %v352
      %354 = vmatmul.bf16.gmra.mxu0 %v339
      %v355 = vpop.f32.mrf.mxu0
      %v356 = vadd.f32 %v305, %v355
      %v357 = vpop.f32.mrf.mxu0
      %v358 = vadd.f32 %v310, %v357
      %359 = vdwg.mxu0
      %v360 = vmax.f32 %v351, 0.0
      %v361 = vmax.f32 %v353, 0.0
      %v362 = vmax.f32 %v356, 0.0
      %v363 = vmax.f32 %v358, 0.0
      %v364 = vld [vmem:[%s3] sm:$0xf]
      %v365 = vld [vmem:[%s3 + $0x4] sm:$0xf]
      %v366 = vld [vmem:[%s3 + $0x8] sm:$0xf]
      %v367 = vld [vmem:[%s3 + $0xc] sm:$0xf]
      %v368 = vld [vmem:[%s3 + $0x10] sm:$0xf]
      %v369 = vld [vmem:[%s3 + $0x14] sm:$0xf]
      %v370 = vld [vmem:[%s3 + $0x18] sm:$0xf]
      %v371 = vld [vmem:[%s3 + $0x1c] sm:$0xf]
      %v372 = vpack.c.bf16 %v361, %v360
      %v373 = vpack.c.bf16 %v363, %v362
      %v374 = vld [vmem:[%s4] sm:$0xff]
      %v375 = vld [vmem:[%s4 + $0x8] sm:$0xff]
      %v376 = vld [vmem:[%s4 + $0x10] sm:$0xff]
      %v377 = vld [vmem:[%s4 + $0x18] sm:$0xff]
      %v378 = vld [vmem:[%s4 + $0x20] sm:$0xff]
      %v379 = vld [vmem:[%s4 + $0x28] sm:$0xff]
      %v380 = vld [vmem:[%s4 + $0x30] sm:$0xff]
      %v381 = vld [vmem:[%s4 + $0x38] sm:$0xff]
      %383 = vset.pattern.permute.xlu0 0
      %384 = vperm.xlu0 %383, %v374
      %v385 = vpop.permute.xlu0 %384
      %388 = vset.pattern.permute.xlu0 0
      %389 = vperm.xlu0 %388, %v375
      %v390 = vpop.permute.xlu0 %389
      %393 = vset.pattern.permute.xlu0 0
      %394 = vperm.xlu0 %393, %v376
      %v395 = vpop.permute.xlu0 %394
      %398 = vset.pattern.permute.xlu0 0
      %399 = vperm.xlu0 %398, %v377
      %v400 = vpop.permute.xlu0 %399
      %403 = vset.pattern.permute.xlu0 0
      %404 = vperm.xlu0 %403, %v378
      %v405 = vpop.permute.xlu0 %404
      %408 = vset.pattern.permute.xlu0 0
      %409 = vperm.xlu0 %408, %v379
      %v410 = vpop.permute.xlu0 %409
      %413 = vset.pattern.permute.xlu0 0
      %414 = vperm.xlu0 %413, %v380
      %v415 = vpop.permute.xlu0 %414
      %418 = vset.pattern.permute.xlu0 0
      %419 = vperm.xlu0 %418, %v381
      %v420 = vpop.permute.xlu0 %419
      %v430 = vunpack.c.l.b16 %v364
      %v431 = vunpack.c.l.b16 %v365
      %v432 = vunpack.c.l.b16 %v366
      %v433 = vunpack.c.l.b16 %v367
      %v434 = vunpack.c.l.b16 %v368
      %v435 = vunpack.c.l.b16 %v369
      %v436 = vunpack.c.l.b16 %v370
      %v437 = vunpack.c.l.b16 %v371
      %v438 = vpack.c.b16 %v431, %v430
      %v439 = vpack.c.b16 %v433, %v432
      %v440 = vpack.c.b16 %v435, %v434
      %v441 = vpack.c.b16 %v437, %v436
      %v443 = vsel %vm334, %v438, 0
      %v446 = vsel %vm334, %v439, 0
      %v449 = vsel %vm334, %v440, 0
      %v452 = vsel %vm334, %v441, 0
      %454 = vmatpush.bf16.msra.mxu0 0
      %455 = vmatpush.bf16.msra.mxu0 0
      %456 = vmatpush.bf16.msra.mxu0 0
      %457 = vmatpush.bf16.msra.mxu0 0
      %458 = vmatpush.bf16.msra.mxu0 0
      %459 = vmatpush.bf16.msra.mxu0 0
      %460 = vmatpush.bf16.msra.mxu0 %v373
      %461 = vmatpush.bf16.msra.mxu0 %v372
      %462 = vmatmul.bf16.gmra.mxu0 %v443
      %v463 = vpop.f32.mrf.mxu0
      %v464 = vadd.f32 %v385, %v463
      %v465 = vpop.f32.mrf.mxu0
      %v466 = vadd.f32 %v390, %v465
      %467 = vmatmul.bf16.gmra.mxu0 %v446
      %v468 = vpop.f32.mrf.mxu0
      %v469 = vadd.f32 %v395, %v468
      %v470 = vpop.f32.mrf.mxu0
      %v471 = vadd.f32 %v400, %v470
      %472 = vmatmul.bf16.gmra.mxu0 %v449
      %v473 = vpop.f32.mrf.mxu0
      %v474 = vadd.f32 %v405, %v473
      %v475 = vpop.f32.mrf.mxu0
      %v476 = vadd.f32 %v410, %v475
      %477 = vmatmul.bf16.gmra.mxu0 %v452
      %v478 = vpop.f32.mrf.mxu0
      %v479 = vadd.f32 %v415, %v478
      %v480 = vpop.f32.mrf.mxu0
      %v481 = vadd.f32 %v420, %v480
      %482 = vdwg.mxu0
      %v483 = vmax.f32 %v464, 0.0
      %v484 = vmax.f32 %v466, 0.0
      %v485 = vmax.f32 %v469, 0.0
      %v486 = vmax.f32 %v471, 0.0
      %v487 = vmax.f32 %v474, 0.0
      %v488 = vmax.f32 %v476, 0.0
      %v489 = vmax.f32 %v479, 0.0
      %v490 = vmax.f32 %v481, 0.0
      %v491 = vld [vmem:[%s5] sm:$0xf]
      %v492 = vld [vmem:[%s5 + $0x4] sm:$0xf]
      %v493 = vpack.c.bf16 %v484, %v483
      %v494 = vpack.c.bf16 %v486, %v485
      %v495 = vpack.c.bf16 %v488, %v487
      %v496 = vpack.c.bf16 %v490, %v489
      %v497 = vld [vmem:[%s6] sm:$0xff]
      %v498 = vld [vmem:[%s6 + $0x8] sm:$0xff]
      %500 = vset.pattern.permute.xlu0 0
      %501 = vperm.xlu0 %500, %v497
      %v502 = vpop.permute.xlu0 %501
      %505 = vset.pattern.permute.xlu0 0
      %506 = vperm.xlu0 %505, %v498
      %v507 = vpop.permute.xlu0 %506
      %v511 = vunpack.c.l.b16 %v491
      %v512 = vunpack.c.l.b16 %v492
      %v513 = vpack.c.b16 %v512, %v511
      %vm514 = vcmask 523264
      %v516 = vsel %vm514, %v513, 0
      %518 = vmatpush.bf16.msra.mxu0 0
      %519 = vmatpush.bf16.msra.mxu0 0
      %520 = vmatpush.bf16.msra.mxu0 0
      %521 = vmatpush.bf16.msra.mxu0 0
      %522 = vmatpush.bf16.msra.mxu0 %v496
      %523 = vmatpush.bf16.msra.mxu0 %v495
      %524 = vmatpush.bf16.msra.mxu0 %v494
      %525 = vmatpush.bf16.msra.mxu0 %v493
      %526 = vmatmul.bf16.gmra.mxu0 %v516
      %v527 = vpop.f32.mrf.mxu0
      %v528 = vadd.f32 %v502, %v527
      %v529 = vpop.f32.mrf.mxu0
      %v530 = vadd.f32 %v507, %v529
      %531 = vdwg.mxu0
      %v532 = vmax.f32 %v528, 0.0
      %v533 = vmax.f32 %v530, 0.0
      %534 = vst.msk [vmem:[%s278] sm:$0xff] %vm514, %v532
      %535 = vst.msk [vmem:[%s278 + $0x8] sm:$0xff] %vm514, %v533
      %p536 = scmp.lt.s32.totalorder %s18, 1
      %s537 = scalar_select %p536, %s18, 1
      %s538 = smul.addr %s537, 2
      %s539 = smul.addr %s538, 8
      %s540 = scalar_lea.vmem %s7, %s539
      // Predicated region
      $region49: #{squeeze_backbone_forward.1} parent=47 // pred_check
        %p541 = pneg %p188
      $region50: #{squeeze_backbone_forward.1} parent=47 // pred_check_branch
        %543 = sbr.rel (%p541) target = $region52
      $region51: #{squeeze_backbone_forward.1} parent=47 // pred_region
        _
      $region52: #{squeeze_backbone_forward.1} parent=47 // pred_fallthru
        _
    $region48: #{squeeze_backbone_forward.1} parent=5 // pred_fallthru
      _
    %p544 = scmp.le.s32.totalorder 2, %s13
    // Predicated region
    $region53: #{squeeze_backbone_forward.1} parent=5 // pred_check
      %p545 = pneg %p544
    $region54: #{squeeze_backbone_forward.1} parent=5 // pred_check_branch
      %547 = sbr.rel (%p545) target = $region56
    $region55: #{squeeze_backbone_forward.1} parent=5 // pred_region
      %s548 = ssub.s32 %s13, 2
      // Predicated region
      $region57: #{squeeze_backbone_forward.1} parent=55 // pred_check
        %p549 = pneg %p194
      $region58: #{squeeze_backbone_forward.1} parent=55 // pred_check_branch
        %551 = sbr.rel (%p549) target = $region60
      $region59: #{squeeze_backbone_forward.1} parent=55 // pred_region
        %p552 = scmp.lt.s32.totalorder %s19, 1
        %s553 = scalar_select %p552, %s19, 1
        %s554 = smul.addr %s553, 2
        %s555 = smul.addr %s554, 8
        %s556 = scalar_lea.vmem %s7, %s555
      $region60: #{squeeze_backbone_forward.1} parent=55 // pred_fallthru
        _
    $region56: #{squeeze_backbone_forward.1} parent=5 // pred_fallthru
      _
  $region6: #{squeeze_backbone_forward.1} parent=0 // loop_footer
    %s17 = sadd.s32 1, %s13
  $region7: #{squeeze_backbone_forward.1} parent=0 // loop_footer_branch
    %12 = sbr.rel target = $region3
  $region8: #{squeeze_backbone_forward.1} parent=0 // loop_exit
    _

</llo_original>
